<compile_context>
chip_gen: v7x
topology: tpu7x:2x2x1
jax: 0.10.0
libtpu: 0.0.40
codegen_flags: <defaults>
</compile_context>

<pallas_src>
import functools

import jax
import jax.numpy as jnp
from jax import lax
from jax.experimental import pallas as pl
from jax.experimental.pallas import tpu as pltpu


def _round_up(x, m):
    return ((x + m - 1) // m) * m


def _choose_ffn_tile(F, preferred):
    """Return (tf, F_pad): a 128-aligned ffn tile and the (possibly padded) ffn extent."""
    preferred = max(128, (preferred // 128) * 128)
    if F <= preferred:
        tf = _round_up(F, 128)
        return tf, tf
    t = preferred
    while t >= 128:
        if F % t == 0:
            return t, F
        t -= 128
    # No 128-aligned divisor <= preferred: zero-pad ffn up to a multiple of `preferred`
    # (padded gate/up columns and down rows contribute exact zeros).
    return preferred, _round_up(F, preferred)


def _vmem_estimate(tm, tf, H, xbytes, wbytes):
    """Rough VMEM footprint of one grid step (double-buffered blocks + scratch)."""
    blocks = 2 * tm * H * xbytes          # x tile (double-buffered)
    blocks += 2 * tm * H * xbytes         # output tile (double-buffered)
    blocks += 2 * H * (2 * tf) * wbytes   # fused [w1|w3] slab (double-buffered)
    blocks += 2 * tf * H * wbytes         # w2 slab (double-buffered)
    acc = tm * H * 4                      # f32 accumulator scratch
    tmp = 4 * tm * tf * 4                 # h / act / gated temporaries (f32)
    return blocks + acc + tmp


def _physical_vmem_bytes():
    try:
        info = pltpu.get_tpu_info()
        cap = getattr(info, "vmem_capacity_bytes", None)
        if cap:
            return int(cap)
    except Exception:
        pass
    # Conservative fallback (v7x has 64 MiB per TensorCore; v5e/v6e have 128 MiB).
    return 64 << 20


def _swiglu_expert_kernel(x_ref, w13_ref, w2_ref, o_ref, acc_ref, *, act, tf):
    # x_ref   : (tm, H)        token tile (full hidden width)
    # w13_ref : (H, 2*tf)      fused [gate | up] weight slab (pre-transposed)
    # w2_ref  : (tf, H)        down-proj slab (pre-transposed)
    # o_ref   : (tm, H)        output tile (resident across the ffn axis)
    # acc_ref : (tm, H) f32    accumulator scratch
    j = pl.program_id(1)

    @pl.when(j == 0)
    def _():
        acc_ref[...] = jnp.zeros_like(acc_ref)

    x = x_ref[...]
    # One MXU matmul for both gate and up projections.
    h = jnp.dot(x, w13_ref[...], preferred_element_type=jnp.float32)  # (tm, 2*tf)
    h1 = h[:, :tf]     # gate (static, 128-aligned slice)
    h3 = h[:, tf:]     # up

    if act == "silu":
        a = h1 * jax.nn.sigmoid(h1)            # EUP exp + VPU mul, f32
    elif act == "gelu":
        # PyTorch "gelu" is the exact erf formulation.
        a = jax.nn.gelu(h1, approximate=False)
    else:
        raise ValueError(f"unsupported hidden_act: {act}")

    g = (a * h3).astype(w2_ref.dtype)
    acc_ref[...] += jnp.dot(g, w2_ref[...], preferred_element_type=jnp.float32)

    @pl.when(j == pl.num_programs(1) - 1)
    def _():
        o_ref[...] = acc_ref[...].astype(o_ref.dtype)


class GRINMoEBlockSparseTop2MLPPallas:
    """Pallas TPU implementation of one GRIN-MoE expert (SwiGLU MLP)."""

    def __init__(self, w1, w2, w3, act="silu", *, block_tokens=1024, block_ffn=512,
                 compute_dtype=None):
        # torch nn.Linear weight layout: (out_features, in_features)
        #   w1, w3: (ffn, hidden)   w2: (hidden, ffn)
        w1 = jnp.asarray(w1)
        w2 = jnp.asarray(w2)
        w3 = jnp.asarray(w3)
        self.ffn_dim, self.hidden_dim = w1.shape
        assert w3.shape == (self.ffn_dim, self.hidden_dim)
        assert w2.shape == (self.hidden_dim, self.ffn_dim)
        if compute_dtype is not None:
            # e.g. jnp.bfloat16: halves DMA bytes and avoids multi-pass f32 MXU;
            # accumulation stays f32 via preferred_element_type.
            w1 = w1.astype(compute_dtype)
            w2 = w2.astype(compute_dtype)
            w3 = w3.astype(compute_dtype)
        self.compute_dtype = compute_dtype
        self.act = act
        self.block_tokens = max(8, (block_tokens // 8) * 8)

        H, F = self.hidden_dim, self.ffn_dim
        tf, F_pad = _choose_ffn_tile(F, block_ffn)
        self.tf, self.F_pad = tf, F_pad
        nF = F_pad // tf

        # Pre-transpose so every MXU operand is lane-dense, zero-pad ffn if needed,
        # and interleave w1^T / w3^T per ffn tile: block j = [gate tile j | up tile j].
        def pad_cols(wt):  # (H, F) -> (H, F_pad)
            return wt if F_pad == F else jnp.pad(wt, ((0, 0), (0, F_pad - F)))

        w1t = pad_cols(w1.T)
        w3t = pad_cols(w3.T)
        self.w13 = jnp.concatenate(
            [w1t.reshape(H, nF, tf), w3t.reshape(H, nF, tf)], axis=-1
        ).reshape(H, 2 * F_pad)
        w2t = w2.T  # (F, H)
        self.w2t = w2t if F_pad == F else jnp.pad(w2t, ((0, F_pad - F), (0, 0)))

    def __call__(self, hidden_states):
        x = jnp.asarray(hidden_states)
        if self.compute_dtype is not None:
            x = x.astype(self.compute_dtype)
        orig_shape = hidden_states.shape
        orig_dtype = jnp.asarray(hidden_states).dtype
        H, F_pad, tf = self.hidden_dim, self.F_pad, self.tf
        x2 = x.reshape(-1, H)
        M = x2.shape[0]

        xbytes = x2.dtype.itemsize
        wbytes = self.w13.dtype.itemsize

        # --- adaptive token tile: as large as the VMEM budget allows, so the
        #     3*H*F weight bytes are streamed from HBM as few times as possible.
        physical = _physical_vmem_bytes()
        budget = int(physical * 0.85)
        M_pad8 = _round_up(M, 8)
        tm = min(self.block_tokens, M_pad8)
        while tm > 8 and _vmem_estimate(tm, tf, H, xbytes, wbytes) > budget:
            tm = max(8, ((tm // 2) // 8) * 8)
        # TODO(synk): on v7x (2 TCs) prefer an even number of token tiles >= 2 so the
        # "parallel" token axis keeps both cores busy when M is large.

        M_pad = _round_up(M, tm)
        if M_pad != M:
            x2 = jnp.pad(x2, ((0, M_pad - M), (0, 0)))

        grid_i = M_pad // tm
        grid_j = F_pad // tf
        grid = (grid_i, grid_j)

        # --- explicit VMEM budget (scoped defaults of 16/32 MiB are too small
        #     for realistic hidden sizes); generous headroom, capped at physical.
        est = _vmem_estimate(tm, tf, H, xbytes, wbytes)
        vmem_limit = int(min(int(physical * 0.9), max(2 * est, 32 << 20)))

        kernel = functools.partial(_swiglu_expert_kernel, act=self.act, tf=tf)

        cost = pl.CostEstimate(
            flops=6 * M_pad * H * F_pad,
            transcendentals=M_pad * F_pad,
            bytes_accessed=grid_i * 3 * H * F_pad * wbytes + 2 * M_pad * H * xbytes,
        )

        out = pl.pallas_call(
            kernel,
            out_shape=jax.ShapeDtypeStruct((M_pad, H), orig_dtype),
            grid_spec=pltpu.PrefetchScalarGridSpec(
                num_scalar_prefetch=0,
                grid=grid,
                in_specs=[
                    pl.BlockSpec((tm, H), lambda i, j: (i, 0)),        # x tile
                    pl.BlockSpec((H, 2 * tf), lambda i, j: (0, j)),    # [w1|w3]^T slab
                    pl.BlockSpec((tf, H), lambda i, j: (j, 0)),        # w2^T slab
                ],
                out_specs=pl.BlockSpec((tm, H), lambda i, j: (i, 0)),
                scratch_shapes=[pltpu.VMEM((tm, H), jnp.float32)],
            ),
            compiler_params=pltpu.CompilerParams(
                dimension_semantics=("parallel", "arbitrary"),
                vmem_limit_bytes=vmem_limit,
            ),
            cost_estimate=cost,
        )(x2, self.w13, self.w2t)

        if M_pad != M:
            out = out[:M]
        return out.reshape(orig_shape)


def _reference(x, w1, w2, w3):
    # Pure-JAX reference of the PyTorch forward (high precision matmuls, silu).
    h1 = jnp.dot(x, w1.T, precision=lax.Precision.HIGHEST)
    h3 = jnp.dot(x, w3.T, precision=lax.Precision.HIGHEST)
    g = (h1 * jax.nn.sigmoid(h1)) * h3
    return jnp.dot(g, w2.T, precision=lax.Precision.HIGHEST)


if __name__ == "__main__":
    key = jax.random.PRNGKey(0)

    # --- test 1: aligned shapes ------------------------------------------------
    batch, seq, hidden, ffn = 2, 8, 128, 256
    k1, k2, k3, k4, k5 = jax.random.split(key, 5)

    x = jax.random.normal(k1, (batch, seq, hidden), dtype=jnp.float32)
    # torch nn.Linear weight layout: (out_features, in_features)
    w1 = jax.random.normal(k2, (ffn, hidden), dtype=jnp.float32) * 0.05
    w2 = jax.random.normal(k3, (hidden, ffn), dtype=jnp.float32) * 0.05
    w3 = jax.random.normal(k4, (ffn, hidden), dtype=jnp.float32) * 0.05

    expert = GRINMoEBlockSparseTop2MLPPallas(w1, w2, w3, act="silu")
    out = jax.block_until_ready(expert(x))
    out_ref = _reference(x, w1, w2, w3)
    assert out.shape == x.shape, (out.shape, x.shape)
    err1 = float(jnp.max(jnp.abs(out - out_ref)))
    assert jnp.allclose(out, out_ref, atol=2e-3, rtol=2e-3), err1

    # --- test 2: awkward shapes (token count not a multiple of 8, ffn not a
    #             multiple of 128) to exercise the zero-padding paths ----------
    b2, s2, h2, f2 = 1, 5, 128, 200
    k6, k7, k8, k9 = jax.random.split(k5, 4)
    x_b = jax.random.normal(k6, (b2, s2, h2), dtype=jnp.float32)
    w1_b = jax.random.normal(k7, (f2, h2), dtype=jnp.float32) * 0.05
    w2_b = jax.random.normal(k8, (h2, f2), dtype=jnp.float32) * 0.05
    w3_b = jax.random.normal(k9, (f2, h2), dtype=jnp.float32) * 0.05

    expert_b = GRINMoEBlockSparseTop2MLPPallas(w1_b, w2_b, w3_b, act="silu")
    out_b = jax.block_until_ready(expert_b(x_b))
    out_b_ref = _reference(x_b, w1_b, w2_b, w3_b)
    assert out_b.shape == x_b.shape, (out_b.shape, x_b.shape)
    err2 = float(jnp.max(jnp.abs(out_b - out_b_ref)))
    assert jnp.allclose(out_b, out_b_ref, atol=2e-3, rtol=2e-3), err2

    print("KERNEL_OK")
</pallas_src>

<mosaic_0001>
module attributes {stable_mosaic.version = 11 : i64} {
  func.func @_swiglu_expert_kernel(%arg0: i32, %arg1: i32, %arg2: memref<16x128xf32, #tpu.memory_space<vmem>>, %arg3: memref<128x512xf32, #tpu.memory_space<vmem>>, %arg4: memref<256x128xf32, #tpu.memory_space<vmem>>, %arg5: memref<16x128xf32, #tpu.memory_space<vmem>>, %arg6: memref<16x128xf32, #tpu.memory_space<vmem>>) attributes {dimension_semantics = [#tpu.dimension_semantics<parallel>, #tpu.dimension_semantics<arbitrary>], iteration_bounds = array<i64: 1, 1>, scalar_prefetch = 0 : i64, scratch_operands = 1 : i64, tpu.core_type = #tpu.core_type<tc>, window_params = [{transform_indices = @transform_0, window_bounds = array<i64: 16, 128>}, {transform_indices = @transform_1, window_bounds = array<i64: 128, 512>}, {transform_indices = @transform_2, window_bounds = array<i64: 256, 128>}, {transform_indices = @transform_3, window_bounds = array<i64: 16, 128>}]} {
    %c0_i32 = arith.constant 0 : i32
    %0 = arith.cmpi eq, %arg1, %c0_i32 : i32
    %1 = arith.extui %0 : i1 to i32
    %c0_i32_0 = arith.constant 0 : i32
    %2 = arith.cmpi ne, %1, %c0_i32_0 : i32
    scf.if %2 {
      %cst_14 = arith.constant 0.000000e+00 : f32
      %23 = vector.broadcast %cst_14 : f32 to vector<16x128xf32>
      %c0_15 = arith.constant 0 : index
      %c0_16 = arith.constant 0 : index
      %24 = vector.load %arg6[%c0_15, %c0_16] : memref<16x128xf32, #tpu.memory_space<vmem>>, vector<16x128xf32>
      tpu.vector_store %arg6[%c0_15, %c0_16], %23 {strides = array<i32>} : memref<16x128xf32, #tpu.memory_space<vmem>>, vector<16x128xf32>,
    } else {
    }
    %c0 = arith.constant 0 : index
    %c0_1 = arith.constant 0 : index
    %3 = vector.load %arg2[%c0, %c0_1] : memref<16x128xf32, #tpu.memory_space<vmem>>, vector<16x128xf32>
    %c0_2 = arith.constant 0 : index
    %c0_3 = arith.constant 0 : index
    %4 = vector.load %arg3[%c0_2, %c0_3] : memref<128x512xf32, #tpu.memory_space<vmem>>, vector<128x512xf32>
    %cst = arith.constant dense<0.000000e+00> : vector<16x512xf32>
    %5 = tpu.matmul %3, %4, %cst {dimension_numbers = #tpu.dot_dimension_numbers<[1], [0], [0], [1], [0, 0, 1, 1], [], []>} : vector<16x128xf32>, vector<128x512xf32>, vector<16x512xf32> -> vector<16x512xf32>
    %6 = vector.extract_strided_slice %5 {offsets = [0, 0], sizes = [16, 256], strides = [1, 1]} : vector<16x512xf32> to vector<16x256xf32>
    %7 = vector.extract_strided_slice %5 {offsets = [0, 256], sizes = [16, 256], strides = [1, 1]} : vector<16x512xf32> to vector<16x256xf32>
    %8 = arith.negf %6 : vector<16x256xf32>
    %9 = math.exp %8 : vector<16x256xf32>
    %cst_4 = arith.constant 1.000000e+00 : f32
    %10 = vector.broadcast %cst_4 : f32 to vector<16x256xf32>
    %11 = arith.addf %10, %9 : vector<16x256xf32>
    %12 = arith.divf %10, %11 : vector<16x256xf32>
    %13 = arith.mulf %6, %12 : vector<16x256xf32>
    %14 = arith.mulf %13, %7 : vector<16x256xf32>
    %c0_5 = arith.constant 0 : index
    %c0_6 = arith.constant 0 : index
    %15 = vector.load %arg6[%c0_5, %c0_6] : memref<16x128xf32, #tpu.memory_space<vmem>>, vector<16x128xf32>
    %c0_7 = arith.constant 0 : index
    %c0_8 = arith.constant 0 : index
    %16 = vector.load %arg4[%c0_7, %c0_8] : memref<256x128xf32, #tpu.memory_space<vmem>>, vector<256x128xf32>
    %cst_9 = arith.constant dense<0.000000e+00> : vector<16x128xf32>
    %17 = tpu.matmul %14, %16, %cst_9 {dimension_numbers = #tpu.dot_dimension_numbers<[1], [0], [0], [1], [0, 0, 1, 1], [], []>} : vector<16x256xf32>, vector<256x128xf32>, vector<16x128xf32> -> vector<16x128xf32>
    %18 = arith.addf %15, %17 : vector<16x128xf32>
    %c0_10 = arith.constant 0 : index
    %c0_11 = arith.constant 0 : index
    %19 = vector.load %arg6[%c0_10, %c0_11] : memref<16x128xf32, #tpu.memory_space<vmem>>, vector<16x128xf32>
    tpu.vector_store %arg6[%c0_10, %c0_11], %18 {strides = array<i32>} : memref<16x128xf32, #tpu.memory_space<vmem>>, vector<16x128xf32>,
    %c0_i32_12 = arith.constant 0 : i32
    %20 = arith.cmpi eq, %arg1, %c0_i32_12 : i32
    %21 = arith.extui %20 : i1 to i32
    %c0_i32_13 = arith.constant 0 : i32
    %22 = arith.cmpi ne, %21, %c0_i32_13 : i32
    scf.if %22 {
      %c0_14 = arith.constant 0 : index
      %c0_15 = arith.constant 0 : index
      %23 = vector.load %arg6[%c0_14, %c0_15] : memref<16x128xf32, #tpu.memory_space<vmem>>, vector<16x128xf32>
      %c0_16 = arith.constant 0 : index
      %c0_17 = arith.constant 0 : index
      %24 = vector.load %arg5[%c0_16, %c0_17] : memref<16x128xf32, #tpu.memory_space<vmem>>, vector<16x128xf32>
      tpu.vector_store %arg5[%c0_16, %c0_17], %23 {strides = array<i32>} : memref<16x128xf32, #tpu.memory_space<vmem>>, vector<16x128xf32>,
    } else {
    }
    return
  }
  func.func @transform_0(%arg0: i32, %arg1: i32) -> (i32, i32) {
    %c0_i32 = arith.constant 0 : i32
    %c0_i32_0 = arith.constant 0 : i32
    return %arg0, %c0_i32 : i32, i32
  }
  func.func @transform_1(%arg0: i32, %arg1: i32) -> (i32, i32) {
    %c0_i32 = arith.constant 0 : i32
    %c0_i32_0 = arith.constant 0 : i32
    return %c0_i32, %arg1 : i32, i32
  }
  func.func @transform_2(%arg0: i32, %arg1: i32) -> (i32, i32) {
    %c0_i32 = arith.constant 0 : i32
    %c0_i32_0 = arith.constant 0 : i32
    return %arg1, %c0_i32 : i32, i32
  }
  func.func @transform_3(%arg0: i32, %arg1: i32) -> (i32, i32) {
    %c0_i32 = arith.constant 0 : i32
    %c0_i32_0 = arith.constant 0 : i32
    return %arg0, %c0_i32 : i32, i32
  }
}

</mosaic_0001>

<llo_original>
// kernel: tpu_custom_call.1
$region0: #{tpu_custom_call.1}
  #allocation0 [shape = 'u32[]', space=smem, size = 0x4, offset = 0x4, fixed_abs, tag = 'smem constant byte address 0x4 - core index']
  #allocation1 [shape = 'u32[144,128]{1,0:T(1,128)}', space=vmem, size = 0x12000, scoped, tag = 'internal scratch']
  #allocation2 [shape = 'f32[16,128]{1,0:T(8,128)}', space=vmem, size = 0x2000, scoped, tag = 'scratch operand']
  %s0 = inlined_call_operand.hbm [shape: f32[16,128], index: 0, kind: input, shape index: {}]
  %s1 = inlined_call_operand.hbm [shape: f32[128,512], index: 1, kind: input, shape index: {}]
  %s2 = inlined_call_operand.hbm [shape: f32[256,128], index: 2, kind: input, shape index: {}]
  %s3 = inlined_call_operand.hbm [shape: f32[16,128], index: 3, kind: output, shape index: {}]
  %s4 = sld [smem:[#allocation0]]
  $region42: #{tpu_custom_call.1} parent=0
    _
  %s6 = ssub.s32 1, %s4
  %s7 = scalar_select 0, %s6, %s4
  $region1: #{tpu_custom_call.1} parent=0
    #allocation3 [shape = 'u8[8192]{0}', space=vmem, size = 0x2000, scoped, tag = 'input window, operand 0, single buffered']
    #allocation4 [shape = 's32[1]{0}', space=sflag, size = 0x4, scoped, tag = 'scoped memory for tpu_custom_call.1']
    #allocation5 [shape = 's32[1]{0}', space=sflag, size = 0x4, scoped, tag = 'scoped memory for tpu_custom_call.1']
    #allocation6 [shape = 'u8[262144]{0}', space=vmem, size = 0x40000, scoped, tag = 'input window, operand 1, single buffered']
    #allocation7 [shape = 's32[1]{0}', space=sflag, size = 0x4, scoped, tag = 'scoped memory for tpu_custom_call.1']
    #allocation8 [shape = 'u8[131072]{0}', space=vmem, size = 0x20000, scoped, tag = 'input window, operand 2, single buffered']
    #allocation9 [shape = 'u8[8192]{0}', space=vmem, size = 0x2000, scoped, tag = 'output window, operand 0, single buffered']
    %8 = vsyncpa [#allocation4], 0
    %9 = vsyncpa [#allocation7], 0
    %10 = vsyncpa [#allocation5], 0
    // Predicated region
    $region2: #{tpu_custom_call.1} parent=1 // pred_check
      _
    $region3: #{tpu_custom_call.1} parent=1 // pred_check_branch
      %12 = sbr.rel (0) target = $region5
    $region4: #{tpu_custom_call.1} parent=1 // pred_region
      %s14 = ssub.s32 256, 256
      %15 = vsyncadd [#allocation4], %s14
      %s16 = sshll.u32 [#allocation3], 4
      %s17 = int_to_ptr.vmem [resolvable:$true] %s16
      %22 = dma.hbm_to_vmem [thread:$0]  %s0, 256, %s17, [#allocation4], 128, 128, 8
    $region5: #{tpu_custom_call.1} parent=1 // pred_fallthru
      _
    // Predicated region
    $region6: #{tpu_custom_call.1} parent=1 // pred_check
      _
    $region7: #{tpu_custom_call.1} parent=1 // pred_check_branch
      %24 = sbr.rel (0) target = $region9
    $region8: #{tpu_custom_call.1} parent=1 // pred_region
      %s26 = ssub.s32 8192, 8192
      %27 = vsyncadd [#allocation7], %s26
      %s28 = sshll.u32 [#allocation6], 4
      %s29 = int_to_ptr.vmem [resolvable:$true] %s28
      %34 = dma.hbm_to_vmem [thread:$0]  %s1, 8192, %s29, [#allocation7], 512, 512, 32
    $region9: #{tpu_custom_call.1} parent=1 // pred_fallthru
      _
    // Predicated region
    $region10: #{tpu_custom_call.1} parent=1 // pred_check
      _
    $region11: #{tpu_custom_call.1} parent=1 // pred_check_branch
      %36 = sbr.rel (0) target = $region13
    $region12: #{tpu_custom_call.1} parent=1 // pred_region
      %s38 = ssub.s32 4096, 4096
      %39 = vsyncadd [#allocation7], %s38
      %s40 = sshll.u32 [#allocation8], 4
      %s41 = int_to_ptr.vmem [resolvable:$true] %s40
      %46 = dma.hbm_to_vmem [thread:$0]  %s2, 4096, %s41, [#allocation7], 128, 128, 8
    $region13: #{tpu_custom_call.1} parent=1 // pred_fallthru
      _
    // Predicated region
    $region14: #{tpu_custom_call.1} parent=1 // pred_check
      _
    $region15: #{tpu_custom_call.1} parent=1 // pred_check_branch
      %48 = sbr.rel (0) target = $region17
    $region16: #{tpu_custom_call.1} parent=1 // pred_region
      %49 = dma.done [#allocation4], 256
    $region17: #{tpu_custom_call.1} parent=1 // pred_fallthru
      _
    // Predicated region
    $region18: #{tpu_custom_call.1} parent=1 // pred_check
      _
    $region19: #{tpu_custom_call.1} parent=1 // pred_check_branch
      %51 = sbr.rel (0) target = $region21
    $region20: #{tpu_custom_call.1} parent=1 // pred_region
      %52 = dma.done [#allocation7], 8192
    $region21: #{tpu_custom_call.1} parent=1 // pred_fallthru
      _
    // Predicated region
    $region22: #{tpu_custom_call.1} parent=1 // pred_check
      _
    $region23: #{tpu_custom_call.1} parent=1 // pred_check_branch
      %54 = sbr.rel (0) target = $region25
    $region24: #{tpu_custom_call.1} parent=1 // pred_region
      %55 = dma.done [#allocation7], 4096
    $region25: #{tpu_custom_call.1} parent=1 // pred_fallthru
      _
    %p56 = scmp.eq.s32.totalorder 0, 0
    // Predicated region
    $region26: #{tpu_custom_call.1} parent=1 // pred_check
      %p57 = pneg %p56
    $region27: #{tpu_custom_call.1} parent=1 // pred_check_branch
      %59 = sbr.rel (%p57) target = $region29
    $region28: #{tpu_custom_call.1} parent=1 // pred_region
      %60 = vst [vmem:[#allocation2] sm:$0xff] 0.0
      %61 = vst [vmem:[#allocation2 + $0x8] sm:$0xff] 0.0
    $region29: #{tpu_custom_call.1} parent=1 // pred_fallthru
      _
    %v62 = vld [vmem:[#allocation3] sm:$0xff]
    %v63 = vld [vmem:[#allocation3 + $0x8] sm:$0xff]
    %v64 = vld [vmem:[#allocation6] sm:$0xff]
    %v65 = vld [vmem:[#allocation6 + $0x8] sm:$0xff]
    %v66 = vld [vmem:[#allocation6 + $0x10] sm:$0xff]
    %v67 = vld [vmem:[#allocation6 + $0x18] sm:$0xff]
    %v68 = vld [vmem:[#allocation6 + $0x20] sm:$0xff]
    %v69 = vld [vmem:[#allocation6 + $0x28] sm:$0xff]
    %v70 = vld [vmem:[#allocation6 + $0x30] sm:$0xff]
    %v71 = vld [vmem:[#allocation6 + $0x38] sm:$0xff]
    %v72 = vld [vmem:[#allocation6 + $0x40] sm:$0xff]
    %v73 = vld [vmem:[#allocation6 + $0x48] sm:$0xff]
    %v74 = vld [vmem:[#allocation6 + $0x50] sm:$0xff]
    %v75 = vld [vmem:[#allocation6 + $0x58] sm:$0xff]
    %v76 = vld [vmem:[#allocation6 + $0x60] sm:$0xff]
    %v77 = vld [vmem:[#allocation6 + $0x68] sm:$0xff]
    %v78 = vld [vmem:[#allocation6 + $0x70] sm:$0xff]
    %v79 = vld [vmem:[#allocation6 + $0x78] sm:$0xff]
    %v80 = vld [vmem:[#allocation6 + $0x80] sm:$0xff]
    %v81 = vld [vmem:[#allocation6 + $0x88] sm:$0xff]
    %v82 = vld [vmem:[#allocation6 + $0x90] sm:$0xff]
    %v83 = vld [vmem:[#allocation6 + $0x98] sm:$0xff]
    %v84 = vld [vmem:[#allocation6 + $0xa0] sm:$0xff]
    %v85 = vld [vmem:[#allocation6 + $0xa8] sm:$0xff]
    %v86 = vld [vmem:[#allocation6 + $0xb0] sm:$0xff]
    %v87 = vld [vmem:[#allocation6 + $0xb8] sm:$0xff]
    %v88 = vld [vmem:[#allocation6 + $0xc0] sm:$0xff]
    %v89 = vld [vmem:[#allocation6 + $0xc8] sm:$0xff]
    %v90 = vld [vmem:[#allocation6 + $0xd0] sm:$0xff]
    %v91 = vld [vmem:[#allocation6 + $0xd8] sm:$0xff]
    %v92 = vld [vmem:[#allocation6 + $0xe0] sm:$0xff]
    %v93 = vld [vmem:[#allocation6 + $0xe8] sm:$0xff]
    %v94 = vld [vmem:[#allocation6 + $0xf0] sm:$0xff]
    %v95 = vld [vmem:[#allocation6 + $0xf8] sm:$0xff]
    %v96 = vld [vmem:[#allocation6 + $0x100] sm:$0xff]
    %v97 = vld [vmem:[#allocation6 + $0x108] sm:$0xff]
    %v98 = vld [vmem:[#allocation6 + $0x110] sm:$0xff]
    %v99 = vld [vmem:[#allocation6 + $0x118] sm:$0xff]
    %v100 = vld [vmem:[#allocation6 + $0x120] sm:$0xff]
    %v101 = vld [vmem:[#allocation6 + $0x128] sm:$0xff]
    %v102 = vld [vmem:[#allocation6 + $0x130] sm:$0xff]
    %v103 = vld [vmem:[#allocation6 + $0x138] sm:$0xff]
    %v104 = vld [vmem:[#allocation6 + $0x140] sm:$0xff]
    %v105 = vld [vmem:[#allocation6 + $0x148] sm:$0xff]
    %v106 = vld [vmem:[#allocation6 + $0x150] sm:$0xff]
    %v107 = vld [vmem:[#allocation6 + $0x158] sm:$0xff]
    %v108 = vld [vmem:[#allocation6 + $0x160] sm:$0xff]
    %v109 = vld [vmem:[#allocation6 + $0x168] sm:$0xff]
    %v110 = vld [vmem:[#allocation6 + $0x170] sm:$0xff]
    %v111 = vld [vmem:[#allocation6 + $0x178] sm:$0xff]
    %v112 = vld [vmem:[#allocation6 + $0x180] sm:$0xff]
    %v113 = vld [vmem:[#allocation6 + $0x188] sm:$0xff]
    %v114 = vld [vmem:[#allocation6 + $0x190] sm:$0xff]
    %v115 = vld [vmem:[#allocation6 + $0x198] sm:$0xff]
    %v116 = vld [vmem:[#allocation6 + $0x1a0] sm:$0xff]
    %v117 = vld [vmem:[#allocation6 + $0x1a8] sm:$0xff]
    %v118 = vld [vmem:[#allocation6 + $0x1b0] sm:$0xff]
    %v119 = vld [vmem:[#allocation6 + $0x1b8] sm:$0xff]
    %v120 = vld [vmem:[#allocation6 + $0x1c0] sm:$0xff]
    %v121 = vld [vmem:[#allocation6 + $0x1c8] sm:$0xff]
    %v122 = vld [vmem:[#allocation6 + $0x1d0] sm:$0xff]
    %v123 = vld [vmem:[#allocation6 + $0x1d8] sm:$0xff]
    %v124 = vld [vmem:[#allocation6 + $0x1e0] sm:$0xff]
    %v125 = vld [vmem:[#allocation6 + $0x1e8] sm:$0xff]
    %v126 = vld [vmem:[#allocation6 + $0x1f0] sm:$0xff]
    %v127 = vld [vmem:[#allocation6 + $0x1f8] sm:$0xff]
    %128 = vmatprep.subr.mxu0 %v65
    %129 = vmatpush1.msra.mxu0 %v64
    %130 = vmatprep.subr.mxu0 %v69
    %131 = vmatpush1.msra.mxu0 %v68
    %132 = vmatprep.subr.mxu0 %v73
    %133 = vmatpush1.msra.mxu0 %v72
    %134 = vmatprep.subr.mxu0 %v77
    %135 = vmatpush1.msra.mxu0 %v76
    %136 = vmatprep.subr.mxu0 %v81
    %137 = vmatpush1.msra.mxu0 %v80
    %138 = vmatprep.subr.mxu0 %v85
    %139 = vmatpush1.msra.mxu0 %v84
    %140 = vmatprep.subr.mxu0 %v89
    %141 = vmatpush1.msra.mxu0 %v88
    %142 = vmatprep.subr.mxu0 %v93
    %143 = vmatpush1.msra.mxu0 %v92
    %144 = vmatprep.subr.mxu0 %v97
    %145 = vmatpush1.msra.mxu0 %v96
    %146 = vmatprep.subr.mxu0 %v101
    %147 = vmatpush1.msra.mxu0 %v100
    %148 = vmatprep.subr.mxu0 %v105
    %149 = vmatpush1.msra.mxu0 %v104
    %150 = vmatprep.subr.mxu0 %v109
    %151 = vmatpush1.msra.mxu0 %v108
    %152 = vmatprep.subr.mxu0 %v113
    %153 = vmatpush1.msra.mxu0 %v112
    %154 = vmatprep.subr.mxu0 %v117
    %155 = vmatpush1.msra.mxu0 %v116
    %156 = vmatprep.subr.mxu0 %v121
    %157 = vmatpush1.msra.mxu0 %v120
    %158 = vmatprep.subr.mxu0 %v125
    %159 = vmatpush1.msra.mxu0 %v124
    %160 = vmatprep.subr.mxu0 0.0
    %161 = vmatpush1.msra.mxu0 0.0
    %162 = vmatprep.subr.mxu0 0.0
    %163 = vmatpush1.msra.mxu0 0.0
    %164 = vmatprep.subr.mxu0 0.0
    %165 = vmatpush1.msra.mxu0 0.0
    %166 = vmatprep.subr.mxu0 0.0
    %167 = vmatpush1.msra.mxu0 0.0
    %168 = vmatprep.subr.mxu0 0.0
    %169 = vmatpush1.msra.mxu0 0.0
    %170 = vmatprep.subr.mxu0 0.0
    %171 = vmatpush1.msra.mxu0 0.0
    %172 = vmatprep.subr.mxu0 0.0
    %173 = vmatpush1.msra.mxu0 0.0
    %174 = vmatprep.subr.mxu0 0.0
    %175 = vmatpush1.msra.mxu0 0.0
    %176 = vmatprep.subr.mxu0 0.0
    %177 = vmatpush1.msra.mxu0 0.0
    %178 = vmatprep.subr.mxu0 0.0
    %179 = vmatpush1.msra.mxu0 0.0
    %180 = vmatprep.subr.mxu0 0.0
    %181 = vmatpush1.msra.mxu0 0.0
    %182 = vmatprep.subr.mxu0 0.0
    %183 = vmatpush1.msra.mxu0 0.0
    %184 = vmatprep.subr.mxu0 0.0
    %185 = vmatpush1.msra.mxu0 0.0
    %186 = vmatprep.subr.mxu0 0.0
    %187 = vmatpush1.msra.mxu0 0.0
    %188 = vmatprep.subr.mxu0 0.0
    %189 = vmatpush1.msra.mxu0 0.0
    %190 = vmatprep.subr.mxu0 0.0
    %191 = vmatpush1.msra.mxu0 0.0
    %192 = vmatprep.mubr.f32.mxu0 0.0
    %193 = vmatmul.mubr.f32.gmra.mrb[0].mxu0 %v62
    %v194 = vpop.f32.mrb[0].mxu0
    %v195 = vadd.f32 0.0, %v194
    %v196 = vpop.f32.mrb[0].mxu0
    %v197 = vadd.f32 0.0, %v196
    %198 = vmatprep.mubr.f32.mxu0 0.0
    %199 = vmatmul.mubr.f32.gmra.mrb[0].mxu0 %v63
    %v200 = vpop.f32.mrb[0].mxu0
    %v201 = vadd.f32 0.0, %v200
    %v202 = vpop.f32.mrb[0].mxu0
    %v203 = vadd.f32 0.0, %v202
    %204 = vdwg.mxu0
    %205 = vmatprep.subr.mxu0 %v67
    %206 = vmatpush1.msra.mxu0 %v66
    %207 = vmatprep.subr.mxu0 %v71
    %208 = vmatpush1.msra.mxu0 %v70
    %209 = vmatprep.subr.mxu0 %v75
    %210 = vmatpush1.msra.mxu0 %v74
    %211 = vmatprep.subr.mxu0 %v79
    %212 = vmatpush1.msra.mxu0 %v78
    %213 = vmatprep.subr.mxu0 %v83
    %214 = vmatpush1.msra.mxu0 %v82
    %215 = vmatprep.subr.mxu0 %v87
    %216 = vmatpush1.msra.mxu0 %v86
    %217 = vmatprep.subr.mxu0 %v91
    %218 = vmatpush1.msra.mxu0 %v90
    %219 = vmatprep.subr.mxu0 %v95
    %220 = vmatpush1.msra.mxu0 %v94
    %221 = vmatprep.subr.mxu0 %v99
    %222 = vmatpush1.msra.mxu0 %v98
    %223 = vmatprep.subr.mxu0 %v103
    %224 = vmatpush1.msra.mxu0 %v102
    %225 = vmatprep.subr.mxu0 %v107
    %226 = vmatpush1.msra.mxu0 %v106
    %227 = vmatprep.subr.mxu0 %v111
    %228 = vmatpush1.msra.mxu0 %v110
    %229 = vmatprep.subr.mxu0 %v115
    %230 = vmatpush1.msra.mxu0 %v114
    %231 = vmatprep.subr.mxu0 %v119
    %232 = vmatpush1.msra.mxu0 %v118
    %233 = vmatprep.subr.mxu0 %v123
    %234 = vmatpush1.msra.mxu0 %v122
    %235 = vmatprep.subr.mxu0 %v127
    %236 = vmatpush1.msra.mxu0 %v126
    %237 = vmatprep.subr.mxu0 0.0
    %238 = vmatpush1.msra.mxu0 0.0
    %239 = vmatprep.subr.mxu0 0.0
    %240 = vmatpush1.msra.mxu0 0.0
    %241 = vmatprep.subr.mxu0 0.0
    %242 = vmatpush1.msra.mxu0 0.0
    %243 = vmatprep.subr.mxu0 0.0
    %244 = vmatpush1.msra.mxu0 0.0
    %245 = vmatprep.subr.mxu0 0.0
    %246 = vmatpush1.msra.mxu0 0.0
    %247 = vmatprep.subr.mxu0 0.0
    %248 = vmatpush1.msra.mxu0 0.0
    %249 = vmatprep.subr.mxu0 0.0
    %250 = vmatpush1.msra.mxu0 0.0
    %251 = vmatprep.subr.mxu0 0.0
    %252 = vmatpush1.msra.mxu0 0.0
    %253 = vmatprep.subr.mxu0 0.0
    %254 = vmatpush1.msra.mxu0 0.0
    %255 = vmatprep.subr.mxu0 0.0
    %256 = vmatpush1.msra.mxu0 0.0
    %257 = vmatprep.subr.mxu0 0.0
    %258 = vmatpush1.msra.mxu0 0.0
    %259 = vmatprep.subr.mxu0 0.0
    %260 = vmatpush1.msra.mxu0 0.0
    %261 = vmatprep.subr.mxu0 0.0
    %262 = vmatpush1.msra.mxu0 0.0
    %263 = vmatprep.subr.mxu0 0.0
    %264 = vmatpush1.msra.mxu0 0.0
    %265 = vmatprep.subr.mxu0 0.0
    %266 = vmatpush1.msra.mxu0 0.0
    %267 = vmatprep.subr.mxu0 0.0
    %268 = vmatpush1.msra.mxu0 0.0
    %269 = vmatprep.mubr.f32.mxu0 0.0
    %270 = vmatmul.mubr.f32.gmra.mrb[0].mxu0 %v62
    %v271 = vpop.f32.mrb[0].mxu0
    %v272 = vadd.f32 0.0, %v271
    %v273 = vpop.f32.mrb[0].mxu0
    %v274 = vadd.f32 0.0, %v273
    %275 = vmatprep.mubr.f32.mxu0 0.0
    %276 = vmatmul.mubr.f32.gmra.mrb[0].mxu0 %v63
    %v277 = vpop.f32.mrb[0].mxu0
    %v278 = vadd.f32 0.0, %v277
    %v279 = vpop.f32.mrb[0].mxu0
    %v280 = vadd.f32 0.0, %v279
    %281 = vdwg.mxu0
    %v282 = vxor.u32 %v195, 2147483648
    %v283 = vxor.u32 %v197, 2147483648
    %v284 = vxor.u32 %v201, 2147483648
    %v285 = vxor.u32 %v203, 2147483648
    %v286 = vmul.f32 %v282, 1.442695
    %v287 = vpow.pop %v286
    %v288 = vmul.f32 %v283, 1.442695
    %v289 = vpow.pop %v288
    %v290 = vmul.f32 %v284, 1.442695
    %v291 = vpow.pop %v290
    %v292 = vmul.f32 %v285, 1.442695
    %v293 = vpow.pop %v292
    %v294 = vadd.f32 %v287, 1.0
    %v295 = vadd.f32 %v289, 1.0
    %v296 = vadd.f32 %v291, 1.0
    %v297 = vadd.f32 %v293, 1.0
    %v298 = vrcp.pop %v294
    %v299 = vmul.f32 1.0, %v298
    %v300 = vrcp.pop %v295
    %v301 = vmul.f32 1.0, %v300
    %v302 = vrcp.pop %v296
    %v303 = vmul.f32 1.0, %v302
    %v304 = vrcp.pop %v297
    %v305 = vmul.f32 1.0, %v304
    %v306 = vmul.f32 %v195, %v299
    %v307 = vmul.f32 %v197, %v301
    %v308 = vmul.f32 %v201, %v303
    %v309 = vmul.f32 %v203, %v305
    %v310 = vmul.f32 %v306, %v272
    %v311 = vmul.f32 %v307, %v274
    %v312 = vmul.f32 %v308, %v278
    %v313 = vmul.f32 %v309, %v280
    %v314 = vld [vmem:[#allocation2] sm:$0xff]
    %v315 = vld [vmem:[#allocation2 + $0x8] sm:$0xff]
    %v316 = vld [vmem:[#allocation8] sm:$0xff]
    %v317 = vld [vmem:[#allocation8 + $0x8] sm:$0xff]
    %v318 = vld [vmem:[#allocation8 + $0x10] sm:$0xff]
    %v319 = vld [vmem:[#allocation8 + $0x18] sm:$0xff]
    %v320 = vld [vmem:[#allocation8 + $0x20] sm:$0xff]
    %v321 = vld [vmem:[#allocation8 + $0x28] sm:$0xff]
    %v322 = vld [vmem:[#allocation8 + $0x30] sm:$0xff]
    %v323 = vld [vmem:[#allocation8 + $0x38] sm:$0xff]
    %v324 = vld [vmem:[#allocation8 + $0x40] sm:$0xff]
    %v325 = vld [vmem:[#allocation8 + $0x48] sm:$0xff]
    %v326 = vld [vmem:[#allocation8 + $0x50] sm:$0xff]
    %v327 = vld [vmem:[#allocation8 + $0x58] sm:$0xff]
    %v328 = vld [vmem:[#allocation8 + $0x60] sm:$0xff]
    %v329 = vld [vmem:[#allocation8 + $0x68] sm:$0xff]
    %v330 = vld [vmem:[#allocation8 + $0x70] sm:$0xff]
    %v331 = vld [vmem:[#allocation8 + $0x78] sm:$0xff]
    %v332 = vld [vmem:[#allocation8 + $0x80] sm:$0xff]
    %v333 = vld [vmem:[#allocation8 + $0x88] sm:$0xff]
    %v334 = vld [vmem:[#allocation8 + $0x90] sm:$0xff]
    %v335 = vld [vmem:[#allocation8 + $0x98] sm:$0xff]
    %v336 = vld [vmem:[#allocation8 + $0xa0] sm:$0xff]
    %v337 = vld [vmem:[#allocation8 + $0xa8] sm:$0xff]
    %v338 = vld [vmem:[#allocation8 + $0xb0] sm:$0xff]
    %v339 = vld [vmem:[#allocation8 + $0xb8] sm:$0xff]
    %v340 = vld [vmem:[#allocation8 + $0xc0] sm:$0xff]
    %v341 = vld [vmem:[#allocation8 + $0xc8] sm:$0xff]
    %v342 = vld [vmem:[#allocation8 + $0xd0] sm:$0xff]
    %v343 = vld [vmem:[#allocation8 + $0xd8] sm:$0xff]
    %v344 = vld [vmem:[#allocation8 + $0xe0] sm:$0xff]
    %v345 = vld [vmem:[#allocation8 + $0xe8] sm:$0xff]
    %v346 = vld [vmem:[#allocation8 + $0xf0] sm:$0xff]
    %v347 = vld [vmem:[#allocation8 + $0xf8] sm:$0xff]
    %348 = vmatprep.subr.mxu0 0.0
    %349 = vmatpush1.msra.mxu0 %v316
    %350 = vmatprep.subr.mxu0 0.0
    %351 = vmatpush1.msra.mxu0 %v317
    %352 = vmatprep.subr.mxu0 0.0
    %353 = vmatpush1.msra.mxu0 %v318
    %354 = vmatprep.subr.mxu0 0.0
    %355 = vmatpush1.msra.mxu0 %v319
    %356 = vmatprep.subr.mxu0 0.0
    %357 = vmatpush1.msra.mxu0 %v320
    %358 = vmatprep.subr.mxu0 0.0
    %359 = vmatpush1.msra.mxu0 %v321
    %360 = vmatprep.subr.mxu0 0.0
    %361 = vmatpush1.msra.mxu0 %v322
    %362 = vmatprep.subr.mxu0 0.0
    %363 = vmatpush1.msra.mxu0 %v323
    %364 = vmatprep.subr.mxu0 0.0
    %365 = vmatpush1.msra.mxu0 %v324
    %366 = vmatprep.subr.mxu0 0.0
    %367 = vmatpush1.msra.mxu0 %v325
    %368 = vmatprep.subr.mxu0 0.0
    %369 = vmatpush1.msra.mxu0 %v326
    %370 = vmatprep.subr.mxu0 0.0
    %371 = vmatpush1.msra.mxu0 %v327
    %372 = vmatprep.subr.mxu0 0.0
    %373 = vmatpush1.msra.mxu0 %v328
    %374 = vmatprep.subr.mxu0 0.0
    %375 = vmatpush1.msra.mxu0 %v329
    %376 = vmatprep.subr.mxu0 0.0
    %377 = vmatpush1.msra.mxu0 %v330
    %378 = vmatprep.subr.mxu0 0.0
    %379 = vmatpush1.msra.mxu0 %v331
    %380 = vmatprep.subr.mxu0 0.0
    %381 = vmatpush1.msra.mxu0 %v332
    %382 = vmatprep.subr.mxu0 0.0
    %383 = vmatpush1.msra.mxu0 %v333
    %384 = vmatprep.subr.mxu0 0.0
    %385 = vmatpush1.msra.mxu0 %v334
    %386 = vmatprep.subr.mxu0 0.0
    %387 = vmatpush1.msra.mxu0 %v335
    %388 = vmatprep.subr.mxu0 0.0
    %389 = vmatpush1.msra.mxu0 %v336
    %390 = vmatprep.subr.mxu0 0.0
    %391 = vmatpush1.msra.mxu0 %v337
    %392 = vmatprep.subr.mxu0 0.0
    %393 = vmatpush1.msra.mxu0 %v338
    %394 = vmatprep.subr.mxu0 0.0
    %395 = vmatpush1.msra.mxu0 %v339
    %396 = vmatprep.subr.mxu0 0.0
    %397 = vmatpush1.msra.mxu0 %v340
    %398 = vmatprep.subr.mxu0 0.0
    %399 = vmatpush1.msra.mxu0 %v341
    %400 = vmatprep.subr.mxu0 0.0
    %401 = vmatpush1.msra.mxu0 %v342
    %402 = vmatprep.subr.mxu0 0.0
    %403 = vmatpush1.msra.mxu0 %v343
    %404 = vmatprep.subr.mxu0 0.0
    %405 = vmatpush1.msra.mxu0 %v344
    %406 = vmatprep.subr.mxu0 0.0
    %407 = vmatpush1.msra.mxu0 %v345
    %408 = vmatprep.subr.mxu0 0.0
    %409 = vmatpush1.msra.mxu0 %v346
    %410 = vmatprep.subr.mxu0 0.0
    %411 = vmatpush1.msra.mxu0 %v347
    %412 = vmatprep.mubr.f32.mxu0 %v311
    %413 = vmatmul.mubr.f32.gmra.mrb[0].mxu0 %v310
    %v414 = vpop.f32.mrb[0].mxu0
    %v415 = vadd.f32 0.0, %v414
    %v416 = vpop.f32.mrb[0].mxu0
    %417 = vmatprep.mubr.f32.mxu0 %v313
    %418 = vmatmul.mubr.f32.gmra.mrb[0].mxu0 %v312
    %v419 = vpop.f32.mrb[0].mxu0
    %v420 = vadd.f32 0.0, %v419
    %v421 = vpop.f32.mrb[0].mxu0
    %422 = vdwg.mxu0
    %v423 = vadd.f32 %v314, %v415
    %v424 = vadd.f32 %v315, %v420
    %425 = vst [vmem:[#allocation2] sm:$0xff] %v423
    %426 = vst [vmem:[#allocation2 + $0x8] sm:$0xff] %v424
    // Predicated region
    $region30: #{tpu_custom_call.1} parent=1 // pred_check
      %p427 = pneg %p56
    $region31: #{tpu_custom_call.1} parent=1 // pred_check_branch
      %429 = sbr.rel (%p427) target = $region33
    $region32: #{tpu_custom_call.1} parent=1 // pred_region
      %v430 = vld [vmem:[#allocation2] sm:$0xff]
      %v431 = vld [vmem:[#allocation2 + $0x8] sm:$0xff]
      %432 = vst [vmem:[#allocation9] sm:$0xff] %v430
      %433 = vst [vmem:[#allocation9 + $0x8] sm:$0xff] %v431
    $region33: #{tpu_custom_call.1} parent=1 // pred_fallthru
      _
    // Predicated region
    $region34: #{tpu_custom_call.1} parent=1 // pred_check
      _
    $region35: #{tpu_custom_call.1} parent=1 // pred_check_branch
      %435 = sbr.rel (0) target = $region37
    $region36: #{tpu_custom_call.1} parent=1 // pred_region
      %s437 = ssub.s32 256, 256
      %438 = vsyncadd [#allocation5], %s437
      %s439 = sshll.u32 [#allocation9], 4
      %s440 = int_to_ptr.vmem [resolvable:$true] %s439
      %445 = dma.vmem_to_hbm [thread:$0]  %s440, 256, %s3, [#allocation5], 128, 128, 8
    $region37: #{tpu_custom_call.1} parent=1 // pred_fallthru
      _
    // Predicated region
    $region38: #{tpu_custom_call.1} parent=1 // pred_check
      _
    $region39: #{tpu_custom_call.1} parent=1 // pred_check_branch
      %447 = sbr.rel (0) target = $region41
    $region40: #{tpu_custom_call.1} parent=1 // pred_region
      %448 = dma.done [#allocation5], 256
    $region41: #{tpu_custom_call.1} parent=1 // pred_fallthru
      _
    %449 = vsyncpa [#allocation4], 1
    %450 = vsyncpa [#allocation7], 1
    %451 = vsyncpa [#allocation5], 1

</llo_original>
